<compile_context>
chip_gen: v7x
topology: tpu7x:2x2x1
jax: 0.10.0
libtpu: 0.0.40
codegen_flags: <defaults>
</compile_context>

<pallas_src>
import jax
import jax.numpy as jnp
from jax.experimental import pallas as pl
from jax.experimental.pallas import tpu as pltpu


def _make_dn_ce_kernel(batch_size, tile_b):
    """Builds the per-tile kernel; batch_size / tile_b are static Python ints."""

    def kernel(s_logits_ref, e_logits_ref, s_labels_ref, e_labels_ref, out_ref):
        # Rows belonging to this tile that are actually inside the batch.
        tile_start = pl.program_id(0) * tile_b
        row = jax.lax.broadcasted_iota(jnp.int32, (tile_b, 1), 0)  # (tb, 1)
        in_batch = (tile_start + row) < batch_size                 # (tb, 1) bool

        def ce_partial(logits_ref, labels_ref):
            logits = logits_ref[...].astype(jnp.float32)   # (tb, C) f32 in-kernel
            labels = labels_ref[...]                       # (tb, 1) int32
            tb, num_classes = logits.shape
            # Ragged-tail rows read unspecified data; mask them out here.
            valid = jnp.logical_and(in_batch, labels >= 0)

            # Numerically stable logsumexp with the label gather fused into
            # the shifted-logits pass (single streaming pass over the tile).
            m = jnp.max(logits, axis=-1, keepdims=True)              # (tb, 1)
            shifted = logits - m                                     # (tb, C)
            col = jax.lax.broadcasted_iota(jnp.int32, (tb, num_classes), 1)
            label_shifted = jnp.sum(jnp.where(col == labels, shifted, 0.0),
                                    axis=-1, keepdims=True)          # (tb, 1)
            lse_shifted = jnp.log(jnp.sum(jnp.exp(shifted),
                                          axis=-1, keepdims=True))   # (tb, 1)
            per_row = jnp.where(valid, lse_shifted - label_shifted, 0.0)
            return jnp.sum(per_row), jnp.sum(valid.astype(jnp.float32))

        s_sum, s_cnt = ce_partial(s_logits_ref, s_labels_ref)
        e_sum, e_cnt = ce_partial(e_logits_ref, e_labels_ref)

        # Lane-dense (8, 128) partial tile:
        #   sublane 0 -> start sum, 1 -> start count, 2 -> end sum, 3 -> end count.
        sub = jax.lax.broadcasted_iota(jnp.int32, (8, 128), 0)
        tile = jnp.where(sub == 0, s_sum,
               jnp.where(sub == 1, s_cnt,
               jnp.where(sub == 2, e_sum,
               jnp.where(sub == 3, e_cnt, 0.0))))
        out_ref[...] = tile

    return kernel


def dn_ce_loss(start_logits, end_logits, start_labels, end_labels, pred_lambda,
               *, tile_b=None):
    """pred_lambda * (CE_mean(start_logits, start_labels) + CE_mean(end, end))."""
    B, C = start_logits.shape
    itemsize = jnp.dtype(start_logits.dtype).itemsize

    if tile_b is None:
        # Size the row tile for ~24 MiB of double-buffered logits
        # (2 inputs x 2 pipeline buffers), capped at 512 rows.
        budget = 24 * 1024 * 1024
        tb = budget // (4 * C * itemsize)
        tb = int(max(8, min(512, (tb // 8) * 8)))
    else:
        tb = int(tile_b)
    # Never tile wider than the (8-rounded) batch itself.
    tb = max(8, min(tb, ((B + 7) // 8) * 8))
    assert tb % 8 == 0

    num_tiles = pl.cdiv(B, tb)

    # Labels as (B, 1) int32 lanes-of-1 blocks (tiny copy; logits are untouched).
    s_lab = start_labels.reshape(B, 1).astype(jnp.int32)
    e_lab = end_labels.reshape(B, 1).astype(jnp.int32)

    cost = pl.CostEstimate(
        flops=int(12 * B * C),
        transcendentals=int(2 * B * C),
        bytes_accessed=int(2 * B * C * itemsize + 2 * B * 4
                           + num_tiles * 8 * 128 * 4),
    )

    partials = pl.pallas_call(
        _make_dn_ce_kernel(B, tb),
        out_shape=jax.ShapeDtypeStruct((num_tiles * 8, 128), jnp.float32),
        grid=(num_tiles,),
        in_specs=[
            pl.BlockSpec((tb, C), lambda i: (i, 0)),
            pl.BlockSpec((tb, C), lambda i: (i, 0)),
            pl.BlockSpec((tb, 1), lambda i: (i, 0)),
            pl.BlockSpec((tb, 1), lambda i: (i, 0)),
        ],
        out_specs=pl.BlockSpec((8, 128), lambda i: (i, 0)),
        compiler_params=pltpu.CompilerParams(
            dimension_semantics=("parallel",),
            vmem_limit_bytes=40 * 1024 * 1024,
        ),
        cost_estimate=cost,
    )(start_logits, end_logits, s_lab, e_lab)

    partials = partials.reshape(num_tiles, 8, 128)
    s_sum = jnp.sum(partials[:, 0, 0])
    s_cnt = jnp.sum(partials[:, 1, 0])
    e_sum = jnp.sum(partials[:, 2, 0])
    e_cnt = jnp.sum(partials[:, 3, 0])
    return pred_lambda * (s_sum / s_cnt + e_sum / e_cnt)


def _reference(start_logits, end_logits, start_labels, end_labels, pred_lambda):
    def ce(logits, labels):
        logp = jax.nn.log_softmax(logits.astype(jnp.float32), axis=-1)
        nll = -jnp.take_along_axis(logp, labels[:, None].astype(jnp.int32),
                                   axis=-1)[:, 0]
        return jnp.mean(nll)
    return pred_lambda * (ce(start_logits, start_labels)
                          + ce(end_logits, end_labels))


if __name__ == "__main__":
    key = jax.random.PRNGKey(0)
    pred_lambda = 0.5

    # --- Test 1: small batch (not a multiple of 8 -> exercises ragged-tail mask). ---
    k1, k2, k3, k4 = jax.random.split(key, 4)
    B, C = 6, 128
    start_logits = jax.random.normal(k1, (B, C), jnp.float32)
    end_logits = jax.random.normal(k2, (B, C), jnp.float32)
    start_labels = jax.random.randint(k3, (B,), 0, C, jnp.int32)
    end_labels = jax.random.randint(k4, (B,), 0, C, jnp.int32)

    loss = dn_ce_loss(start_logits, end_logits, start_labels, end_labels,
                      pred_lambda)
    jax.block_until_ready(loss)
    ref = _reference(start_logits, end_logits, start_labels, end_labels,
                     pred_lambda)
    assert jnp.allclose(loss, ref, atol=1e-5, rtol=1e-5), (loss, ref)

    # --- Test 2: multi-tile grid with a ragged last tile (tile_b=8, B=20). ---
    k5, k6, k7, k8 = jax.random.split(jax.random.PRNGKey(0), 4)
    B2, C2 = 20, 128
    sl2 = jax.random.normal(k5, (B2, C2), jnp.float32)
    el2 = jax.random.normal(k6, (B2, C2), jnp.float32)
    slab2 = jax.random.randint(k7, (B2,), 0, C2, jnp.int32)
    elab2 = jax.random.randint(k8, (B2,), 0, C2, jnp.int32)

    loss2 = dn_ce_loss(sl2, el2, slab2, elab2, pred_lambda, tile_b=8)
    jax.block_until_ready(loss2)
    ref2 = _reference(sl2, el2, slab2, elab2, pred_lambda)
    assert jnp.allclose(loss2, ref2, atol=1e-5, rtol=1e-5), (loss2, ref2)

    # --- Test 3: bf16 logits (native-dtype streaming, f32 math in-kernel). ---
    sl3 = sl2.astype(jnp.bfloat16)
    el3 = el2.astype(jnp.bfloat16)
    loss3 = dn_ce_loss(sl3, el3, slab2, elab2, pred_lambda)
    jax.block_until_ready(loss3)
    ref3 = _reference(sl3, el3, slab2, elab2, pred_lambda)
    assert jnp.allclose(loss3, ref3, atol=1e-2, rtol=1e-2), (loss3, ref3)

    print("KERNEL_OK")
</pallas_src>

<mosaic_0001>
module attributes {stable_mosaic.version = 11 : i64} {
  func.func @kernel(%arg0: i32, %arg1: memref<8x128xf32, #tpu.memory_space<vmem>>, %arg2: memref<8x128xf32, #tpu.memory_space<vmem>>, %arg3: memref<8x1xi32, #tpu.memory_space<vmem>>, %arg4: memref<8x1xi32, #tpu.memory_space<vmem>>, %arg5: memref<8x128xf32, #tpu.memory_space<vmem>>) attributes {dimension_semantics = [#tpu.dimension_semantics<parallel>], iteration_bounds = array<i64: 1>, scalar_prefetch = 0 : i64, scratch_operands = 0 : i64, tpu.core_type = #tpu.core_type<tc>, window_params = [{transform_indices = @transform_0, window_bounds = array<i64: 8, 128>}, {transform_indices = @transform_1, window_bounds = array<i64: 8, 128>}, {transform_indices = @transform_2, window_bounds = array<i64: 8, 1>}, {transform_indices = @transform_3, window_bounds = array<i64: 8, 1>}, {transform_indices = @transform_4, window_bounds = array<i64: 8, 128>}]} {
    %c8_i32 = arith.constant 8 : i32
    %0 = arith.muli %arg0, %c8_i32 : i32
    %1 = tpu.iota {dimensions = array<i32: 0>} : vector<8x1xi32>
    %2 = vector.broadcast %0 : i32 to vector<8x1xi32>
    %3 = arith.addi %2, %1 : vector<8x1xi32>
    %c6_i32 = arith.constant 6 : i32
    %4 = vector.broadcast %c6_i32 : i32 to vector<8x1xi32>
    %5 = arith.cmpi slt, %3, %4 : vector<8x1xi32>
    %c0 = arith.constant 0 : index
    %c0_0 = arith.constant 0 : index
    %6 = vector.load %arg1[%c0, %c0_0] : memref<8x128xf32, #tpu.memory_space<vmem>>, vector<8x128xf32>
    %c0_1 = arith.constant 0 : index
    %c0_2 = arith.constant 0 : index
    %7 = vector.load %arg3[%c0_1, %c0_2] : memref<8x1xi32, #tpu.memory_space<vmem>>, vector<8x1xi32>
    %c0_i32 = arith.constant 0 : i32
    %8 = vector.broadcast %c0_i32 : i32 to vector<8x1xi32>
    %9 = arith.cmpi sge, %7, %8 : vector<8x1xi32>
    %10 = arith.andi %5, %9 : vector<8x1xi1>
    %cst = arith.constant dense<0xFF800000> : vector<8xf32>
    %11 = vector.multi_reduction <maximumf>, %6, %cst [1] : vector<8x128xf32> to vector<8xf32>
    %12 = vector.shape_cast %11 : vector<8xf32> to vector<8x1xf32>
    %13 = vector.broadcast %12 : vector<8x1xf32> to vector<8x128xf32>
    %14 = arith.subf %6, %13 : vector<8x128xf32>
    %15 = tpu.iota {dimensions = array<i32: 1>} : vector<8x128xi32>
    %16 = vector.broadcast %7 : vector<8x1xi32> to vector<8x128xi32>
    %17 = arith.cmpi eq, %15, %16 : vector<8x128xi32>
    %cst_3 = arith.constant 0.000000e+00 : f32
    %18 = vector.broadcast %cst_3 : f32 to vector<8x128xf32>
    %19 = arith.select %17, %14, %18 : vector<8x128xi1>, vector<8x128xf32>
    %cst_4 = arith.constant dense<0.000000e+00> : vector<8xf32>
    %20 = vector.multi_reduction <add>, %19, %cst_4 [1] : vector<8x128xf32> to vector<8xf32>
    %21 = vector.shape_cast %20 : vector<8xf32> to vector<8x1xf32>
    %22 = math.exp %14 : vector<8x128xf32>
    %cst_5 = arith.constant dense<0.000000e+00> : vector<8xf32>
    %23 = vector.multi_reduction <add>, %22, %cst_5 [1] : vector<8x128xf32> to vector<8xf32>
    %24 = vector.shape_cast %23 : vector<8xf32> to vector<8x1xf32>
    %25 = math.log %24 : vector<8x1xf32>
    %26 = arith.subf %25, %21 : vector<8x1xf32>
    %cst_6 = arith.constant 0.000000e+00 : f32
    %27 = vector.broadcast %cst_6 : f32 to vector<8x1xf32>
    %28 = arith.select %10, %26, %27 : vector<8x1xi1>, vector<8x1xf32>
    %29 = vector.shape_cast %28 : vector<8x1xf32> to vector<1x8x1xf32>
    %cst_7 = arith.constant dense<0.000000e+00> : vector<1xf32>
    %30 = vector.multi_reduction <add>, %29, %cst_7 [1, 2] : vector<1x8x1xf32> to vector<1xf32>
    %31 = vector.shape_cast %30 : vector<1xf32> to vector<1x1x1xf32>
    %32 = vector.extract %31[0, 0, 0] : f32 from vector<1x1x1xf32>
    %33 = arith.extui %10 : vector<8x1xi1> to vector<8x1xi32>
    %34 = arith.sitofp %33 : vector<8x1xi32> to vector<8x1xf32>
    %35 = vector.shape_cast %34 : vector<8x1xf32> to vector<1x8x1xf32>
    %cst_8 = arith.constant dense<0.000000e+00> : vector<1xf32>
    %36 = vector.multi_reduction <add>, %35, %cst_8 [1, 2] : vector<1x8x1xf32> to vector<1xf32>
    %37 = vector.shape_cast %36 : vector<1xf32> to vector<1x1x1xf32>
    %38 = vector.extract %37[0, 0, 0] : f32 from vector<1x1x1xf32>
    %c0_9 = arith.constant 0 : index
    %c0_10 = arith.constant 0 : index
    %39 = vector.load %arg2[%c0_9, %c0_10] : memref<8x128xf32, #tpu.memory_space<vmem>>, vector<8x128xf32>
    %c0_11 = arith.constant 0 : index
    %c0_12 = arith.constant 0 : index
    %40 = vector.load %arg4[%c0_11, %c0_12] : memref<8x1xi32, #tpu.memory_space<vmem>>, vector<8x1xi32>
    %c0_i32_13 = arith.constant 0 : i32
    %41 = vector.broadcast %c0_i32_13 : i32 to vector<8x1xi32>
    %42 = arith.cmpi sge, %40, %41 : vector<8x1xi32>
    %43 = arith.andi %5, %42 : vector<8x1xi1>
    %cst_14 = arith.constant dense<0xFF800000> : vector<8xf32>
    %44 = vector.multi_reduction <maximumf>, %39, %cst_14 [1] : vector<8x128xf32> to vector<8xf32>
    %45 = vector.shape_cast %44 : vector<8xf32> to vector<8x1xf32>
    %46 = vector.broadcast %45 : vector<8x1xf32> to vector<8x128xf32>
    %47 = arith.subf %39, %46 : vector<8x128xf32>
    %48 = tpu.iota {dimensions = array<i32: 1>} : vector<8x128xi32>
    %49 = vector.broadcast %40 : vector<8x1xi32> to vector<8x128xi32>
    %50 = arith.cmpi eq, %48, %49 : vector<8x128xi32>
    %cst_15 = arith.constant 0.000000e+00 : f32
    %51 = vector.broadcast %cst_15 : f32 to vector<8x128xf32>
    %52 = arith.select %50, %47, %51 : vector<8x128xi1>, vector<8x128xf32>
    %cst_16 = arith.constant dense<0.000000e+00> : vector<8xf32>
    %53 = vector.multi_reduction <add>, %52, %cst_16 [1] : vector<8x128xf32> to vector<8xf32>
    %54 = vector.shape_cast %53 : vector<8xf32> to vector<8x1xf32>
    %55 = math.exp %47 : vector<8x128xf32>
    %cst_17 = arith.constant dense<0.000000e+00> : vector<8xf32>
    %56 = vector.multi_reduction <add>, %55, %cst_17 [1] : vector<8x128xf32> to vector<8xf32>
    %57 = vector.shape_cast %56 : vector<8xf32> to vector<8x1xf32>
    %58 = math.log %57 : vector<8x1xf32>
    %59 = arith.subf %58, %54 : vector<8x1xf32>
    %cst_18 = arith.constant 0.000000e+00 : f32
    %60 = vector.broadcast %cst_18 : f32 to vector<8x1xf32>
    %61 = arith.select %43, %59, %60 : vector<8x1xi1>, vector<8x1xf32>
    %62 = vector.shape_cast %61 : vector<8x1xf32> to vector<1x8x1xf32>
    %cst_19 = arith.constant dense<0.000000e+00> : vector<1xf32>
    %63 = vector.multi_reduction <add>, %62, %cst_19 [1, 2] : vector<1x8x1xf32> to vector<1xf32>
    %64 = vector.shape_cast %63 : vector<1xf32> to vector<1x1x1xf32>
    %65 = vector.extract %64[0, 0, 0] : f32 from vector<1x1x1xf32>
    %66 = arith.extui %43 : vector<8x1xi1> to vector<8x1xi32>
    %67 = arith.sitofp %66 : vector<8x1xi32> to vector<8x1xf32>
    %68 = vector.shape_cast %67 : vector<8x1xf32> to vector<1x8x1xf32>
    %cst_20 = arith.constant dense<0.000000e+00> : vector<1xf32>
    %69 = vector.multi_reduction <add>, %68, %cst_20 [1, 2] : vector<1x8x1xf32> to vector<1xf32>
    %70 = vector.shape_cast %69 : vector<1xf32> to vector<1x1x1xf32>
    %71 = vector.extract %70[0, 0, 0] : f32 from vector<1x1x1xf32>
    %72 = tpu.iota {dimensions = array<i32: 0>} : vector<8x128xi32>
    %c0_i32_21 = arith.constant 0 : i32
    %73 = vector.broadcast %c0_i32_21 : i32 to vector<8x128xi32>
    %74 = arith.cmpi eq, %72, %73 : vector<8x128xi32>
    %c1_i32 = arith.constant 1 : i32
    %75 = vector.broadcast %c1_i32 : i32 to vector<8x128xi32>
    %76 = arith.cmpi eq, %72, %75 : vector<8x128xi32>
    %c2_i32 = arith.constant 2 : i32
    %77 = vector.broadcast %c2_i32 : i32 to vector<8x128xi32>
    %78 = arith.cmpi eq, %72, %77 : vector<8x128xi32>
    %c3_i32 = arith.constant 3 : i32
    %79 = vector.broadcast %c3_i32 : i32 to vector<8x128xi32>
    %80 = arith.cmpi eq, %72, %79 : vector<8x128xi32>
    %cst_22 = arith.constant 0.000000e+00 : f32
    %81 = vector.broadcast %71 : f32 to vector<8x128xf32>
    %82 = vector.broadcast %cst_22 : f32 to vector<8x128xf32>
    %83 = arith.select %80, %81, %82 : vector<8x128xi1>, vector<8x128xf32>
    %84 = vector.broadcast %65 : f32 to vector<8x128xf32>
    %85 = arith.select %78, %84, %83 : vector<8x128xi1>, vector<8x128xf32>
    %86 = vector.broadcast %38 : f32 to vector<8x128xf32>
    %87 = arith.select %76, %86, %85 : vector<8x128xi1>, vector<8x128xf32>
    %88 = vector.broadcast %32 : f32 to vector<8x128xf32>
    %89 = arith.select %74, %88, %87 : vector<8x128xi1>, vector<8x128xf32>
    %c0_23 = arith.constant 0 : index
    %c0_24 = arith.constant 0 : index
    %90 = vector.load %arg5[%c0_23, %c0_24] : memref<8x128xf32, #tpu.memory_space<vmem>>, vector<8x128xf32>
    tpu.vector_store %arg5[%c0_23, %c0_24], %89 {strides = array<i32>} : memref<8x128xf32, #tpu.memory_space<vmem>>, vector<8x128xf32>,
    return
  }
  func.func @transform_0(%arg0: i32) -> (i32, i32) {
    %c0_i32 = arith.constant 0 : i32
    %c0_i32_0 = arith.constant 0 : i32
    return %arg0, %c0_i32 : i32, i32
  }
  func.func @transform_1(%arg0: i32) -> (i32, i32) {
    %c0_i32 = arith.constant 0 : i32
    %c0_i32_0 = arith.constant 0 : i32
    return %arg0, %c0_i32 : i32, i32
  }
  func.func @transform_2(%arg0: i32) -> (i32, i32) {
    %c0_i32 = arith.constant 0 : i32
    %c0_i32_0 = arith.constant 0 : i32
    return %arg0, %c0_i32 : i32, i32
  }
  func.func @transform_3(%arg0: i32) -> (i32, i32) {
    %c0_i32 = arith.constant 0 : i32
    %c0_i32_0 = arith.constant 0 : i32
    return %arg0, %c0_i32 : i32, i32
  }
  func.func @transform_4(%arg0: i32) -> (i32, i32) {
    %c0_i32 = arith.constant 0 : i32
    %c0_i32_0 = arith.constant 0 : i32
    return %arg0, %c0_i32 : i32, i32
  }
}

</mosaic_0001>

<llo_original>
// kernel: tpu_custom_call.1
$region0: #{tpu_custom_call.1}
  #allocation0 [shape = 'u32[]', space=smem, size = 0x4, offset = 0x4, fixed_abs, tag = 'smem constant byte address 0x4 - core index']
  #allocation1 [shape = 'u32[144,128]{1,0:T(1,128)}', space=vmem, size = 0x12000, scoped, tag = 'internal scratch']
  %s0 = inlined_call_operand.vmem [shape: f32[6,128], index: 0, kind: input, shape index: {}]
  %s1 = inlined_call_operand.vmem [shape: f32[6,128], index: 1, kind: input, shape index: {}]
  %s2 = inlined_call_operand.vmem [shape: s32[6,1], index: 2, kind: input, shape index: {}]
  %s3 = inlined_call_operand.vmem [shape: s32[6,1], index: 3, kind: input, shape index: {}]
  %s4 = inlined_call_operand.hbm [shape: f32[8,128], index: 4, kind: output, shape index: {}]
  %s5 = sld [smem:[#allocation0]]
  $region26: #{tpu_custom_call.1} parent=0
    _
  %s7 = ssub.s32 1, %s5
  %s8 = scalar_select 0, %s7, %s5
  $region1: #{tpu_custom_call.1} parent=0
    #allocation2 [shape = 'u8[4096]{0}', space=vmem, size = 0x1000, scoped, tag = 'output window, operand 0, single buffered']
    #allocation3 [shape = 's32[1]{0}', space=sflag, size = 0x4, scoped, tag = 'scoped memory for tpu_custom_call.1']
    %9 = vsyncpa [#allocation3], 0
    // Predicated region
    $region2: #{tpu_custom_call.1} parent=1 // pred_check
      _
    $region3: #{tpu_custom_call.1} parent=1 // pred_check_branch
      %11 = sbr.rel (0) target = $region5
    $region4: #{tpu_custom_call.1} parent=1 // pred_region
      _
    $region5: #{tpu_custom_call.1} parent=1 // pred_fallthru
      _
    // Predicated region
    $region6: #{tpu_custom_call.1} parent=1 // pred_check
      _
    $region7: #{tpu_custom_call.1} parent=1 // pred_check_branch
      %13 = sbr.rel (0) target = $region9
    $region8: #{tpu_custom_call.1} parent=1 // pred_region
      _
    $region9: #{tpu_custom_call.1} parent=1 // pred_fallthru
      _
    // Predicated region
    $region10: #{tpu_custom_call.1} parent=1 // pred_check
      _
    $region11: #{tpu_custom_call.1} parent=1 // pred_check_branch
      %15 = sbr.rel (0) target = $region13
    $region12: #{tpu_custom_call.1} parent=1 // pred_region
      _
    $region13: #{tpu_custom_call.1} parent=1 // pred_fallthru
      _
    // Predicated region
    $region14: #{tpu_custom_call.1} parent=1 // pred_check
      _
    $region15: #{tpu_custom_call.1} parent=1 // pred_check_branch
      %17 = sbr.rel (0) target = $region17
    $region16: #{tpu_custom_call.1} parent=1 // pred_region
      _
    $region17: #{tpu_custom_call.1} parent=1 // pred_fallthru
      _
    %s18 = smul.u32 0, 8
    %v19 = vlaneseq
    %v20 = vshrl.u32 %v19, 7
    %v21 = vstv %s18
    %v22 = vadd.s32 %v21, %v20
    %vm23 = vcmp.lt.s32.totalorder %v22, 6
    %v24 = vld [vmem:[%s0] sm:$0xff]
    %v25 = vld [vmem:[%s2] sm:$0xff]
    %vm26 = vcmp.ge.s32.totalorder %v25, 0
    %vm27 = vmand %vm23, %vm26
    %28 = vmax.xlane.f32.xlu0 %v24
    %v29 = vpop.xlane.xlu0 %28
    %v30 = vsub.f32 %v24, %v29
    %v31 = vlaneseq
    %v32 = vand.u32 %v31, 127
    %33 = vset.pattern.permute.xlu0 0
    %34 = vperm.xlu0 %33, %v25
    %v35 = vpop.permute.xlu0 %34
    %vm36 = vcmp.eq.s32.totalorder %v32, %v35
    %v37 = vsel %vm36, %v30, 0.0
    %38 = vadd.xlane.f32.xlu0 %v37
    %v39 = vpop.xlane.xlu0 %38
    %v40 = vmul.f32 %v30, 1.442695
    %v41 = vpow.pop %v40
    %42 = vadd.xlane.f32.xlu0 %v41
    %v43 = vpop.xlane.xlu0 %42
    %v44 = vlog2.pop %v43
    %v45 = vmul.f32 %v44, 0.6931472
    %v46 = vsub.f32 %v45, %v39
    %v47 = vsel %vm27, %v46, 0.0
    %vm48 = vcmask 7168
    %v49 = vsel %vm48, %v47, 0.0
    %50 = vadd.xlane.f32.xlu0 %v49
    %v51 = vpop.xlane.xlu0 %50
    %v52 = vrot.slane %v51, 4
    %v53 = vadd.f32 %v51, %v52
    %v54 = vrot.slane %v53, 2
    %v55 = vadd.f32 %v53, %v54
    %v56 = vrot.slane %v55, 1
    %v57 = vadd.f32 %v55, %v56
    %s58 = vtos %v57
    %v59 = vsel %vm27, 1, 0
    %v60 = vcvt.s32.f32 %v59
    %v61 = vsel %vm48, %v60, 0.0
    %62 = vadd.xlane.f32.xlu0 %v61
    %v63 = vpop.xlane.xlu0 %62
    %v64 = vrot.slane %v63, 4
    %v65 = vadd.f32 %v63, %v64
    %v66 = vrot.slane %v65, 2
    %v67 = vadd.f32 %v65, %v66
    %v68 = vrot.slane %v67, 1
    %v69 = vadd.f32 %v67, %v68
    %s70 = vtos %v69
    %v71 = vld [vmem:[%s1] sm:$0xff]
    %v72 = vld [vmem:[%s3] sm:$0xff]
    %vm73 = vcmp.ge.s32.totalorder %v72, 0
    %vm74 = vmand %vm23, %vm73
    %75 = vmax.xlane.f32.xlu0 %v71
    %v76 = vpop.xlane.xlu0 %75
    %v77 = vsub.f32 %v71, %v76
    %78 = vset.pattern.permute.xlu0 0
    %79 = vperm.xlu0 %78, %v72
    %v80 = vpop.permute.xlu0 %79
    %vm81 = vcmp.eq.s32.totalorder %v32, %v80
    %v82 = vsel %vm81, %v77, 0.0
    %83 = vadd.xlane.f32.xlu0 %v82
    %v84 = vpop.xlane.xlu0 %83
    %v85 = vmul.f32 %v77, 1.442695
    %v86 = vpow.pop %v85
    %87 = vadd.xlane.f32.xlu0 %v86
    %v88 = vpop.xlane.xlu0 %87
    %v89 = vlog2.pop %v88
    %v90 = vmul.f32 %v89, 0.6931472
    %v91 = vsub.f32 %v90, %v84
    %v92 = vsel %vm74, %v91, 0.0
    %v93 = vsel %vm48, %v92, 0.0
    %94 = vadd.xlane.f32.xlu0 %v93
    %v95 = vpop.xlane.xlu0 %94
    %v96 = vrot.slane %v95, 4
    %v97 = vadd.f32 %v95, %v96
    %v98 = vrot.slane %v97, 2
    %v99 = vadd.f32 %v97, %v98
    %v100 = vrot.slane %v99, 1
    %v101 = vadd.f32 %v99, %v100
    %s102 = vtos %v101
    %v103 = vsel %vm74, 1, 0
    %v104 = vcvt.s32.f32 %v103
    %v105 = vsel %vm48, %v104, 0.0
    %106 = vadd.xlane.f32.xlu0 %v105
    %v107 = vpop.xlane.xlu0 %106
    %v108 = vrot.slane %v107, 4
    %v109 = vadd.f32 %v107, %v108
    %v110 = vrot.slane %v109, 2
    %v111 = vadd.f32 %v109, %v110
    %v112 = vrot.slane %v111, 1
    %v113 = vadd.f32 %v111, %v112
    %s114 = vtos %v113
    %vm115 = vcmp.eq.s32.totalorder %v20, 0
    %vm116 = vcmp.eq.s32.totalorder %v20, 1
    %vm117 = vcmp.eq.s32.totalorder %v20, 2
    %vm118 = vcmp.eq.s32.totalorder %v20, 3
    %v119 = vstv %s114
    %v120 = vsel %vm118, %v119, 0.0
    %v121 = vstv %s102
    %v122 = vsel %vm117, %v121, %v120
    %v123 = vstv %s70
    %v124 = vsel %vm116, %v123, %v122
    %v125 = vstv %s58
    %v126 = vsel %vm115, %v125, %v124
    %127 = vst [vmem:[#allocation2] sm:$0xff] %v126
    // Predicated region
    $region18: #{tpu_custom_call.1} parent=1 // pred_check
      _
    $region19: #{tpu_custom_call.1} parent=1 // pred_check_branch
      %129 = sbr.rel (0) target = $region21
    $region20: #{tpu_custom_call.1} parent=1 // pred_region
      %s131 = ssub.s32 128, 128
      %132 = vsyncadd [#allocation3], %s131
      %s134 = sshll.u32 [#allocation2], 4
      %s135 = int_to_ptr.vmem [resolvable:$true] %s134
      %137 = dma.vmem_to_hbm [thread:$0]  %s135, 128, %s4, [#allocation3]
    $region21: #{tpu_custom_call.1} parent=1 // pred_fallthru
      _
    // Predicated region
    $region22: #{tpu_custom_call.1} parent=1 // pred_check
      _
    $region23: #{tpu_custom_call.1} parent=1 // pred_check_branch
      %139 = sbr.rel (0) target = $region25
    $region24: #{tpu_custom_call.1} parent=1 // pred_region
      %140 = dma.done [#allocation3], 128
    $region25: #{tpu_custom_call.1} parent=1 // pred_fallthru
      _
    %141 = vsyncpa [#allocation3], 1

</llo_original>
